<compile_context>
chip_gen: v5e
topology: v5e:2x2
jax: 0.10.0
libtpu: 0.0.40
codegen_flags: <defaults>
</compile_context>

<pallas_src>
import jax
import jax.numpy as jnp
from jax import lax
from jax.experimental import pallas as pl
from jax.experimental.pallas import tpu as pltpu


def _linear_add_kernel(x_ref, w_ref, b_ref, other_ref, o_ref):
    # One MXU matmul (f32 accumulate, contraction on K of BOTH operands so no
    # transpose is ever materialized) + two VPU adds; everything is a single
    # VMEM-resident block, so no pl.when / accumulator / grid is needed.
    y = lax.dot_general(
        x_ref[...],                       # (B, K)
        w_ref[...],                       # (N, K)  -- PyTorch Linear layout
        dimension_numbers=(((1,), (1,)), ((), ())),
        preferred_element_type=jnp.float32,
    )                                     # (B, N)
    o_ref[0, 0] = (y + b_ref[...] + other_ref[0, 0]).astype(o_ref.dtype)


@jax.jit
def model_forward(x, weight, bias, other):
    """nn.Linear(128, 64)(x) + other, with PyTorch broadcasting semantics.

    x:      (B, 128) float32, with B == other.shape[-2] (== 64) so that
            (B, 64) + (1, 1, 64, 64) broadcasts as in PyTorch.
    weight: (64, 128) — PyTorch Linear layout (out_features, in_features).
    bias:   (64,)
    other:  (1, 1, 64, 64)
    returns (1, 1, 64, 64)
    """
    B, K = x.shape
    N, K_w = weight.shape
    assert K == K_w, f"feature mismatch: {K} vs {K_w}"
    assert other.shape == (1, 1, N, N), f"unexpected `other` shape {other.shape}"
    assert B == other.shape[-2], (
        f"batch {B} must equal {other.shape[-2]} for the broadcast add to be valid"
    )

    # (64,) -> (1, 64): metadata-only under jit; gives the kernel a 2-D ref
    # that broadcasts cleanly against the (64, 64) matmul result.
    bias2d = bias.reshape(1, N)

    out = pl.pallas_call(
        _linear_add_kernel,
        out_shape=jax.ShapeDtypeStruct((1, 1, N, N), x.dtype),
        # Grid-less call: whole arrays land in VMEM, one DMA per operand.
        in_specs=[
            pl.BlockSpec(memory_space=pltpu.MemorySpace.VMEM),  # x
            pl.BlockSpec(memory_space=pltpu.MemorySpace.VMEM),  # weight
            pl.BlockSpec(memory_space=pltpu.MemorySpace.VMEM),  # bias
            pl.BlockSpec(memory_space=pltpu.MemorySpace.VMEM),  # other
        ],
        out_specs=pl.BlockSpec(memory_space=pltpu.MemorySpace.VMEM),
        # Tiny cost hint so XLA does not over-schedule around the custom call.
        cost_estimate=pl.CostEstimate(
            flops=2 * B * K * N,
            transcendentals=0,
            bytes_accessed=4 * (B * K + N * K + N + N * N + N * N),
        ),
    )(x, weight, bias2d, other)

    return out


if __name__ == "__main__":
    key = jax.random.PRNGKey(0)
    k_x, k_w, k_b, k_o = jax.random.split(key, 4)

    B, K, N = 64, 128, 64  # B=64 so (B, 64) + (1, 1, 64, 64) broadcasts
    x = jax.random.normal(k_x, (B, K), dtype=jnp.float32)
    weight = jax.random.normal(k_w, (N, K), dtype=jnp.float32) * 0.05
    bias = jax.random.normal(k_b, (N,), dtype=jnp.float32)
    other = jax.random.normal(k_o, (1, 1, N, N), dtype=jnp.float32)

    out = model_forward(x, weight, bias, other)
    out = jax.block_until_ready(out)

    # Pure-JAX reference (same math as the PyTorch module).
    ref = (x @ weight.T + bias[None, :]) + other
    assert out.shape == (1, 1, N, N), out.shape
    assert jnp.allclose(out, ref, atol=1e-4, rtol=1e-4), "mismatch vs reference"

    print("KERNEL_OK")
</pallas_src>

<mosaic_0001>
module attributes {stable_mosaic.version = 11 : i64} {
  func.func @_linear_add_kernel(%arg0: memref<64x128xf32, #tpu.memory_space<vmem>>, %arg1: memref<64x128xf32, #tpu.memory_space<vmem>>, %arg2: memref<1x64xf32, #tpu.memory_space<vmem>>, %arg3: memref<1x1x64x64xf32, #tpu.memory_space<vmem>>, %arg4: memref<1x1x64x64xf32, #tpu.memory_space<vmem>>) attributes {dimension_semantics = [], scalar_prefetch = 0 : i64, scratch_operands = 0 : i64, tpu.core_type = #tpu.core_type<tc>} {
    %c0 = arith.constant 0 : index
    %c0_0 = arith.constant 0 : index
    %0 = vector.load %arg0[%c0, %c0_0] : memref<64x128xf32, #tpu.memory_space<vmem>>, vector<64x128xf32>
    %c0_1 = arith.constant 0 : index
    %c0_2 = arith.constant 0 : index
    %1 = vector.load %arg1[%c0_1, %c0_2] : memref<64x128xf32, #tpu.memory_space<vmem>>, vector<64x128xf32>
    %cst = arith.constant dense<0.000000e+00> : vector<64x64xf32>
    %2 = tpu.matmul %0, %1, %cst {dimension_numbers = #tpu.dot_dimension_numbers<[1], [1], [0], [0], [0, 0, 1, 0], [], []>} : vector<64x128xf32>, vector<64x128xf32>, vector<64x64xf32> -> vector<64x64xf32>
    %c0_3 = arith.constant 0 : index
    %c0_4 = arith.constant 0 : index
    %3 = vector.load %arg2[%c0_3, %c0_4] : memref<1x64xf32, #tpu.memory_space<vmem>>, vector<1x64xf32>
    %4 = vector.broadcast %3 : vector<1x64xf32> to vector<64x64xf32>
    %5 = arith.addf %2, %4 : vector<64x64xf32>
    %c0_5 = arith.constant 0 : index
    %c0_6 = arith.constant 0 : index
    %c0_7 = arith.constant 0 : index
    %c0_8 = arith.constant 0 : index
    %6 = vector.load %arg3[%c0_5, %c0_6, %c0_7, %c0_8] : memref<1x1x64x64xf32, #tpu.memory_space<vmem>>, vector<1x1x64x64xf32>
    %7 = vector.shape_cast %6 : vector<1x1x64x64xf32> to vector<64x64xf32>
    %8 = arith.addf %5, %7 : vector<64x64xf32>
    %c0_9 = arith.constant 0 : index
    %c0_10 = arith.constant 0 : index
    %c0_11 = arith.constant 0 : index
    %c0_12 = arith.constant 0 : index
    %9 = vector.load %arg4[%c0_9, %c0_10, %c0_11, %c0_12] : memref<1x1x64x64xf32, #tpu.memory_space<vmem>>, vector<1x1x64x64xf32>
    %10 = vector.shape_cast %9 : vector<1x1x64x64xf32> to vector<64x64xf32>
    %11 = vector.shape_cast %8 : vector<64x64xf32> to vector<1x1x64x64xf32>
    tpu.vector_store %arg4[%c0_9, %c0_10, %c0_11, %c0_12], %11 {strides = array<i32>} : memref<1x1x64x64xf32, #tpu.memory_space<vmem>>, vector<1x1x64x64xf32>,
    return
  }
}

</mosaic_0001>

<llo_original>
// kernel: model_forward.1
$region0: #{model_forward.1}
  #allocation0 [shape = 'u32[]', space=smem, size = 0x4, offset = 0x4, fixed_abs, tag = 'smem constant byte address 0x4 - core index']
  #allocation1 [shape = 'u32[72,128]{1,0:T(1,128)}', space=vmem, size = 0x9000, scoped, tag = 'internal scratch']
  %s0 = inlined_call_operand.hbm [shape: f32[64,128], index: 0, kind: input, shape index: {}]
  %s1 = inlined_call_operand.hbm [shape: f32[64,128], index: 1, kind: input, shape index: {}]
  %s2 = inlined_call_operand.vmem [shape: f32[1,64], index: 2, kind: input, shape index: {}]
  %s3 = inlined_call_operand.hbm [shape: f32[1,1,64,64], index: 3, kind: input, shape index: {}]
  %s4 = inlined_call_operand.hbm [shape: f32[1,1,64,64], index: 4, kind: output, shape index: {}]
  %s5 = sld [smem:[#allocation0]]
  $region38: #{model_forward.1} parent=0
    _
  %s7 = ssub.s32 1, %s5
  %s8 = scalar_select 0, %s7, %s5
  $region1: #{model_forward.1} parent=0
    #allocation2 [shape = 'u8[32768]{0}', space=vmem, size = 0x8000, scoped, tag = 'input window, operand 0, single buffered']
    #allocation3 [shape = 's32[1]{0}', space=sflag, size = 0x4, scoped, tag = 'scoped memory for model_forward.1']
    #allocation4 [shape = 's32[1]{0}', space=sflag, size = 0x4, scoped, tag = 'scoped memory for model_forward.1']
    #allocation5 [shape = 'u8[32768]{0}', space=vmem, size = 0x8000, scoped, tag = 'input window, operand 1, single buffered']
    #allocation6 [shape = 's32[1]{0}', space=sflag, size = 0x4, scoped, tag = 'scoped memory for model_forward.1']
    #allocation7 [shape = 'u8[32768]{0}', space=vmem, size = 0x8000, scoped, tag = 'input window, operand 3, single buffered']
    #allocation8 [shape = 'u8[32768]{0}', space=vmem, size = 0x8000, scoped, tag = 'output window, operand 0, single buffered']
    %9 = vsyncpa [#allocation3], 0
    %10 = vsyncpa [#allocation6], 0
    %11 = vsyncpa [#allocation4], 0
    // Predicated region
    $region2: #{model_forward.1} parent=1 // pred_check
      _
    $region3: #{model_forward.1} parent=1 // pred_check_branch
      %13 = sbr.rel (0) target = $region5
    $region4: #{model_forward.1} parent=1 // pred_region
      %15 = vsyncadd [#allocation3], 0
      %s16 = sshll.u32 %s0, 4
      %s17 = int_to_ptr.hbm [resolvable:$true] %s16
      %s18 = sshll.u32 [#allocation2], 4
      %s19 = int_to_ptr.vmem [resolvable:$true] %s18
      %24 = dma.hbm_to_vmem [thread:$0]  %s17, 1024, %s19, [#allocation3], 128, 128, 8
    $region5: #{model_forward.1} parent=1 // pred_fallthru
      _
    // Predicated region
    $region6: #{model_forward.1} parent=1 // pred_check
      _
    $region7: #{model_forward.1} parent=1 // pred_check_branch
      %26 = sbr.rel (0) target = $region9
    $region8: #{model_forward.1} parent=1 // pred_region
      %28 = vsyncadd [#allocation6], 0
      %s29 = sshll.u32 %s1, 4
      %s30 = int_to_ptr.hbm [resolvable:$true] %s29
      %s31 = sshll.u32 [#allocation5], 4
      %s32 = int_to_ptr.vmem [resolvable:$true] %s31
      %37 = dma.hbm_to_vmem [thread:$0]  %s30, 1024, %s32, [#allocation6], 128, 128, 8
    $region9: #{model_forward.1} parent=1 // pred_fallthru
      _
    // Predicated region
    $region10: #{model_forward.1} parent=1 // pred_check
      _
    $region11: #{model_forward.1} parent=1 // pred_check_branch
      %39 = sbr.rel (0) target = $region13
    $region12: #{model_forward.1} parent=1 // pred_region
      _
    $region13: #{model_forward.1} parent=1 // pred_fallthru
      _
    // Predicated region
    $region14: #{model_forward.1} parent=1 // pred_check
      _
    $region15: #{model_forward.1} parent=1 // pred_check_branch
      %41 = sbr.rel (0) target = $region17
    $region16: #{model_forward.1} parent=1 // pred_region
      %43 = vsyncadd [#allocation6], 0
      %s44 = sshll.u32 %s3, 4
      %s45 = int_to_ptr.hbm [resolvable:$true] %s44
      %s46 = sshll.u32 [#allocation7], 4
      %s47 = int_to_ptr.vmem [resolvable:$true] %s46
      %52 = dma.hbm_to_vmem [thread:$0]  %s45, 1024, %s47, [#allocation6], 128, 128, 8
    $region17: #{model_forward.1} parent=1 // pred_fallthru
      _
    // Predicated region
    $region18: #{model_forward.1} parent=1 // pred_check
      _
    $region19: #{model_forward.1} parent=1 // pred_check_branch
      %54 = sbr.rel (0) target = $region21
    $region20: #{model_forward.1} parent=1 // pred_region
      %56 = dma.done [#allocation3], 1024
    $region21: #{model_forward.1} parent=1 // pred_fallthru
      _
    // Predicated region
    $region22: #{model_forward.1} parent=1 // pred_check
      _
    $region23: #{model_forward.1} parent=1 // pred_check_branch
      %58 = sbr.rel (0) target = $region25
    $region24: #{model_forward.1} parent=1 // pred_region
      %60 = dma.done [#allocation6], 1024
    $region25: #{model_forward.1} parent=1 // pred_fallthru
      _
    // Predicated region
    $region26: #{model_forward.1} parent=1 // pred_check
      _
    $region27: #{model_forward.1} parent=1 // pred_check_branch
      %62 = sbr.rel (0) target = $region29
    $region28: #{model_forward.1} parent=1 // pred_region
      %64 = dma.done [#allocation6], 1024
    $region29: #{model_forward.1} parent=1 // pred_fallthru
      _
    %v65 = vld [vmem:[#allocation2] sm:$0xff]
    %v66 = vld [vmem:[#allocation2 + $0x8] sm:$0xff]
    %v67 = vld [vmem:[#allocation2 + $0x10] sm:$0xff]
    %v68 = vld [vmem:[#allocation2 + $0x18] sm:$0xff]
    %v69 = vld [vmem:[#allocation2 + $0x20] sm:$0xff]
    %v70 = vld [vmem:[#allocation2 + $0x28] sm:$0xff]
    %v71 = vld [vmem:[#allocation2 + $0x30] sm:$0xff]
    %v72 = vld [vmem:[#allocation2 + $0x38] sm:$0xff]
    %v73 = vld [vmem:[#allocation5] sm:$0xff]
    %v74 = vld [vmem:[#allocation5 + $0x8] sm:$0xff]
    %v75 = vld [vmem:[#allocation5 + $0x10] sm:$0xff]
    %v76 = vld [vmem:[#allocation5 + $0x18] sm:$0xff]
    %v77 = vld [vmem:[#allocation5 + $0x20] sm:$0xff]
    %v78 = vld [vmem:[#allocation5 + $0x28] sm:$0xff]
    %v79 = vld [vmem:[#allocation5 + $0x30] sm:$0xff]
    %v80 = vld [vmem:[#allocation5 + $0x38] sm:$0xff]
    %v81 = vld [vmem:[%s2] sm:$0x1]
    %v83 = vperm.slane %v81, 0
    %85 = vmatpush.xpose.msra.mxu0 0.0
    %86 = vmatpush.xpose.msra.mxu0 0.0
    %87 = vmatpush.xpose.msra.mxu0 0.0
    %88 = vmatpush.xpose.msra.mxu0 0.0
    %89 = vmatpush.xpose.msra.mxu0 0.0
    %90 = vmatpush.xpose.msra.mxu0 0.0
    %91 = vmatpush.xpose.msra.mxu0 0.0
    %92 = vmatpush.xpose.msra.mxu0 0.0
    %93 = vmatpush.xpose.msra.mxu0 %v80
    %94 = vmatpush.xpose.msra.mxu0 %v79
    %95 = vmatpush.xpose.msra.mxu0 %v78
    %96 = vmatpush.xpose.msra.mxu0 %v77
    %97 = vmatpush.xpose.msra.mxu0 %v76
    %98 = vmatpush.xpose.msra.mxu0 %v75
    %99 = vmatpush.xpose.msra.mxu0 %v74
    %100 = vmatpush.xpose.msra.mxu0 %v73
    %101 = vmatmul.f32.gmra.mxu0 %v65
    %v102 = vpop.f32.mrf.mxu0
    %v103 = vadd.f32 %v83, %v102
    %104 = vmatmul.f32.gmra.mxu0 %v66
    %v105 = vpop.f32.mrf.mxu0
    %v106 = vadd.f32 %v83, %v105
    %107 = vmatmul.f32.gmra.mxu0 %v67
    %v108 = vpop.f32.mrf.mxu0
    %v109 = vadd.f32 %v83, %v108
    %110 = vmatmul.f32.gmra.mxu0 %v68
    %v111 = vpop.f32.mrf.mxu0
    %v112 = vadd.f32 %v83, %v111
    %113 = vmatmul.f32.gmra.mxu0 %v69
    %v114 = vpop.f32.mrf.mxu0
    %v115 = vadd.f32 %v83, %v114
    %116 = vmatmul.f32.gmra.mxu0 %v70
    %v117 = vpop.f32.mrf.mxu0
    %v118 = vadd.f32 %v83, %v117
    %119 = vmatmul.f32.gmra.mxu0 %v71
    %v120 = vpop.f32.mrf.mxu0
    %v121 = vadd.f32 %v83, %v120
    %122 = vmatmul.f32.gmra.mxu0 %v72
    %v123 = vpop.f32.mrf.mxu0
    %v124 = vadd.f32 %v83, %v123
    %125 = vdwg.mxu0
    %v126 = vld [vmem:[#allocation7] sm:$0xff]
    %v127 = vld [vmem:[#allocation7 + $0x8] sm:$0xff]
    %v128 = vld [vmem:[#allocation7 + $0x10] sm:$0xff]
    %v129 = vld [vmem:[#allocation7 + $0x18] sm:$0xff]
    %v130 = vld [vmem:[#allocation7 + $0x20] sm:$0xff]
    %v131 = vld [vmem:[#allocation7 + $0x28] sm:$0xff]
    %v132 = vld [vmem:[#allocation7 + $0x30] sm:$0xff]
    %v133 = vld [vmem:[#allocation7 + $0x38] sm:$0xff]
    %v134 = vadd.f32 %v103, %v126
    %v135 = vadd.f32 %v106, %v127
    %v136 = vadd.f32 %v109, %v128
    %v137 = vadd.f32 %v112, %v129
    %v138 = vadd.f32 %v115, %v130
    %v139 = vadd.f32 %v118, %v131
    %v140 = vadd.f32 %v121, %v132
    %v141 = vadd.f32 %v124, %v133
    %vm142 = vcmask 523264
    %143 = vst.msk [vmem:[#allocation8] sm:$0xff] %vm142, %v134
    %144 = vst.msk [vmem:[#allocation8 + $0x8] sm:$0xff] %vm142, %v135
    %145 = vst.msk [vmem:[#allocation8 + $0x10] sm:$0xff] %vm142, %v136
    %146 = vst.msk [vmem:[#allocation8 + $0x18] sm:$0xff] %vm142, %v137
    %147 = vst.msk [vmem:[#allocation8 + $0x20] sm:$0xff] %vm142, %v138
    %148 = vst.msk [vmem:[#allocation8 + $0x28] sm:$0xff] %vm142, %v139
    %149 = vst.msk [vmem:[#allocation8 + $0x30] sm:$0xff] %vm142, %v140
    %150 = vst.msk [vmem:[#allocation8 + $0x38] sm:$0xff] %vm142, %v141
    // Predicated region
    $region30: #{model_forward.1} parent=1 // pred_check
      _
    $region31: #{model_forward.1} parent=1 // pred_check_branch
      %152 = sbr.rel (0) target = $region33
    $region32: #{model_forward.1} parent=1 // pred_region
      %154 = vsyncadd [#allocation4], 0
      %s155 = sshll.u32 [#allocation8], 4
      %s156 = int_to_ptr.vmem [resolvable:$true] %s155
      %s157 = sshll.u32 %s4, 4
      %s158 = int_to_ptr.hbm [resolvable:$true] %s157
      %163 = dma.vmem_to_hbm [thread:$0]  %s156, 1024, %s158, [#allocation4], 128, 128, 8
    $region33: #{model_forward.1} parent=1 // pred_fallthru
      _
    // Predicated region
    $region34: #{model_forward.1} parent=1 // pred_check
      _
    $region35: #{model_forward.1} parent=1 // pred_check_branch
      %165 = sbr.rel (0) target = $region37
    $region36: #{model_forward.1} parent=1 // pred_region
      %167 = dma.done [#allocation4], 1024
    $region37: #{model_forward.1} parent=1 // pred_fallthru
      _
    %168 = vsyncpa [#allocation3], 1
    %169 = vsyncpa [#allocation6], 1
    %170 = vsyncpa [#allocation4], 1

</llo_original>
